<compile_context>
chip_gen: v7x
topology: tpu7x:2x2x1
jax: 0.10.0
libtpu: 0.0.40
codegen_flags: <defaults>
</compile_context>

<pallas_src>
import jax
import jax.numpy as jnp
from jax.experimental import pallas as pl
from jax.experimental.pallas import tpu as pltpu

_SUBLANE = 8  # row-tile granularity


def _round_up(n: int, m: int) -> int:
    return pl.cdiv(n, m) * m


def _mlp_kernel(x_ref, w1_ref, b1_ref, w2_ref, b2_ref, o_ref):
    # Hidden layer: (tm, obs) @ (obs, hid) + (1, hid) -> tanh   (MXU + VPU + EUP)
    h = jnp.dot(x_ref[...], w1_ref[...], preferred_element_type=jnp.float32)
    h = jnp.tanh(h + b1_ref[...])
    # Output layer: (tm, hid) @ (hid, act) + (1, act) -> tanh
    o = jnp.dot(h, w2_ref[...], preferred_element_type=jnp.float32)
    o_ref[...] = jnp.tanh(o + b2_ref[...]).astype(o_ref.dtype)


def net_forward(x, w1, b1, w2, b2, *, block_rows: int = 1024, min_pallas_rows: int = 0):
    """Batched MLP forward.

    x:  (B, obs)    — B may be population * per-member batch; any size.
    w1: (obs, hid)  b1: (1, hid)   (pre-transposed nn.Linear weights)
    w2: (hid, act)  b2: (1, act)
    Returns (B, act) float32.
    """
    # Explicit f32 (cheap no-op for f32 inputs; avoids silent bf16 on v5e).
    x = x.astype(jnp.float32)
    w1 = w1.astype(jnp.float32)
    b1 = b1.astype(jnp.float32)
    w2 = w2.astype(jnp.float32)
    b2 = b2.astype(jnp.float32)

    B, obs = x.shape
    hid = w1.shape[1]
    act = w2.shape[1]

    # Tiny single-rollout-step path: pure launch latency, let XLA fuse it.
    if B < min_pallas_rows:
        h = jnp.tanh(x @ w1 + b1)
        return jnp.tanh(h @ w2 + b2)

    # Row tile: whole batch (rounded to 8) in one grid step, capped so the
    # (tm, hid) f32 intermediate never pressures VMEM/vregs for huge B.
    tm = min(block_rows, _round_up(B, _SUBLANE))
    tm = _round_up(tm, _SUBLANE)
    num_blocks = pl.cdiv(B, tm)
    B_p = num_blocks * tm

    # Row-only padding (no lane inflation); skipped entirely when B_p == B.
    x_in = x if B_p == B else jnp.zeros((B_p, obs), jnp.float32).at[:B].set(x)

    out = pl.pallas_call(
        _mlp_kernel,
        out_shape=jax.ShapeDtypeStruct((B_p, act), jnp.float32),
        grid=(num_blocks,),
        in_specs=[
            # activations stream: one row-tile per grid step
            pl.BlockSpec((tm, obs), lambda i: (i, 0)),
            # weights/biases: constant block index -> DMA'd once, VMEM-resident
            pl.BlockSpec((obs, hid), lambda i: (0, 0)),
            pl.BlockSpec((1, hid), lambda i: (0, 0)),
            pl.BlockSpec((hid, act), lambda i: (0, 0)),
            pl.BlockSpec((1, act), lambda i: (0, 0)),
        ],
        out_specs=pl.BlockSpec((tm, act), lambda i: (i, 0)),
        compiler_params=pltpu.CompilerParams(
            dimension_semantics=("parallel",),
        ),
    )(x_in, w1, b1, w2, b2)

    return out if B_p == B else out[:B]


def init_params(key, obs_size, act_size, hid_size=64, dtype=jnp.float32):
    """Deterministic init mimicking nn.Linear (uniform +-1/sqrt(fan_in)),
    stored pre-transposed as (in, out)."""
    k1, k2, k3, k4 = jax.random.split(key, 4)
    lim1 = 1.0 / jnp.sqrt(jnp.array(obs_size, dtype))
    lim2 = 1.0 / jnp.sqrt(jnp.array(hid_size, dtype))
    w1 = jax.random.uniform(k1, (obs_size, hid_size), dtype, -lim1, lim1)
    b1 = jax.random.uniform(k2, (1, hid_size), dtype, -lim1, lim1)
    w2 = jax.random.uniform(k3, (hid_size, act_size), dtype, -lim2, lim2)
    b2 = jax.random.uniform(k4, (1, act_size), dtype, -lim2, lim2)
    return w1, b1, w2, b2


def reference_forward(x, w1, b1, w2, b2):
    h = jnp.tanh(x @ w1 + b1)
    return jnp.tanh(h @ w2 + b2)


if __name__ == "__main__":
    # HalfCheetah-like dims: obs=17, act=6, hid=64.
    OBS, ACT, HID = 17, 6, 64

    key = jax.random.PRNGKey(0)
    k_p, k_x1, k_x2 = jax.random.split(key, 3)
    w1, b1, w2, b2 = init_params(k_p, OBS, ACT, HID)

    # ES slab of forward passes fused into one single-grid-step kernel call.
    x_big = jax.random.normal(k_x1, (256, OBS), dtype=jnp.float32)
    y_big = jax.block_until_ready(net_forward(x_big, w1, b1, w2, b2))
    y_big_ref = reference_forward(x_big, w1, b1, w2, b2)
    assert y_big.shape == (256, ACT)
    assert jnp.allclose(y_big, y_big_ref, atol=1e-5, rtol=1e-5)

    # Non-multiple-of-8 batch exercises the (cheap) row-padding path.
    x_small = jax.random.normal(k_x2, (10, OBS), dtype=jnp.float32)
    y_small = jax.block_until_ready(net_forward(x_small, w1, b1, w2, b2))
    y_small_ref = reference_forward(x_small, w1, b1, w2, b2)
    assert y_small.shape == (10, ACT)
    assert jnp.allclose(y_small, y_small_ref, atol=1e-5, rtol=1e-5)

    print("KERNEL_OK")
</pallas_src>

<mosaic_0001>
module attributes {stable_mosaic.version = 11 : i64} {
  func.func @_mlp_kernel(%arg0: i32, %arg1: memref<256x17xf32, #tpu.memory_space<vmem>>, %arg2: memref<17x64xf32, #tpu.memory_space<vmem>>, %arg3: memref<1x64xf32, #tpu.memory_space<vmem>>, %arg4: memref<64x6xf32, #tpu.memory_space<vmem>>, %arg5: memref<1x6xf32, #tpu.memory_space<vmem>>, %arg6: memref<256x6xf32, #tpu.memory_space<vmem>>) attributes {dimension_semantics = [#tpu.dimension_semantics<parallel>], iteration_bounds = array<i64: 1>, scalar_prefetch = 0 : i64, scratch_operands = 0 : i64, tpu.core_type = #tpu.core_type<tc>, window_params = [{transform_indices = @transform_0, window_bounds = array<i64: 256, 17>}, {pipeline_mode = #tpu.pipeline_mode<synchronous>, transform_indices = @transform_1, window_bounds = array<i64: 17, 64>}, {pipeline_mode = #tpu.pipeline_mode<synchronous>, transform_indices = @transform_2, window_bounds = array<i64: 1, 64>}, {pipeline_mode = #tpu.pipeline_mode<synchronous>, transform_indices = @transform_3, window_bounds = array<i64: 64, 6>}, {pipeline_mode = #tpu.pipeline_mode<synchronous>, transform_indices = @transform_4, window_bounds = array<i64: 1, 6>}, {transform_indices = @transform_5, window_bounds = array<i64: 256, 6>}]} {
    %c0 = arith.constant 0 : index
    %c0_0 = arith.constant 0 : index
    %0 = vector.load %arg1[%c0, %c0_0] : memref<256x17xf32, #tpu.memory_space<vmem>>, vector<256x17xf32>
    %c0_1 = arith.constant 0 : index
    %c0_2 = arith.constant 0 : index
    %1 = vector.load %arg2[%c0_1, %c0_2] : memref<17x64xf32, #tpu.memory_space<vmem>>, vector<17x64xf32>
    %cst = arith.constant dense<0.000000e+00> : vector<256x64xf32>
    %2 = tpu.matmul %0, %1, %cst {dimension_numbers = #tpu.dot_dimension_numbers<[1], [0], [0], [1], [0, 0, 1, 1], [], []>} : vector<256x17xf32>, vector<17x64xf32>, vector<256x64xf32> -> vector<256x64xf32>
    %c0_3 = arith.constant 0 : index
    %c0_4 = arith.constant 0 : index
    %3 = vector.load %arg3[%c0_3, %c0_4] : memref<1x64xf32, #tpu.memory_space<vmem>>, vector<1x64xf32>
    %4 = vector.broadcast %3 : vector<1x64xf32> to vector<256x64xf32>
    %5 = arith.addf %2, %4 : vector<256x64xf32>
    %6 = math.tanh %5 : vector<256x64xf32>
    %c0_5 = arith.constant 0 : index
    %c0_6 = arith.constant 0 : index
    %7 = vector.load %arg4[%c0_5, %c0_6] : memref<64x6xf32, #tpu.memory_space<vmem>>, vector<64x6xf32>
    %cst_7 = arith.constant dense<0.000000e+00> : vector<256x6xf32>
    %8 = tpu.matmul %6, %7, %cst_7 {dimension_numbers = #tpu.dot_dimension_numbers<[1], [0], [0], [1], [0, 0, 1, 1], [], []>} : vector<256x64xf32>, vector<64x6xf32>, vector<256x6xf32> -> vector<256x6xf32>
    %c0_8 = arith.constant 0 : index
    %c0_9 = arith.constant 0 : index
    %9 = vector.load %arg5[%c0_8, %c0_9] : memref<1x6xf32, #tpu.memory_space<vmem>>, vector<1x6xf32>
    %10 = vector.broadcast %9 : vector<1x6xf32> to vector<256x6xf32>
    %11 = arith.addf %8, %10 : vector<256x6xf32>
    %12 = math.tanh %11 : vector<256x6xf32>
    %c0_10 = arith.constant 0 : index
    %c0_11 = arith.constant 0 : index
    %13 = vector.load %arg6[%c0_10, %c0_11] : memref<256x6xf32, #tpu.memory_space<vmem>>, vector<256x6xf32>
    tpu.vector_store %arg6[%c0_10, %c0_11], %12 {strides = array<i32>} : memref<256x6xf32, #tpu.memory_space<vmem>>, vector<256x6xf32>,
    return
  }
  func.func @transform_0(%arg0: i32) -> (i32, i32) {
    %c0_i32 = arith.constant 0 : i32
    %c0_i32_0 = arith.constant 0 : i32
    return %arg0, %c0_i32 : i32, i32
  }
  func.func @transform_1(%arg0: i32) -> (i32, i32) {
    %c0_i32 = arith.constant 0 : i32
    %c0_i32_0 = arith.constant 0 : i32
    %c0_i32_1 = arith.constant 0 : i32
    return %c0_i32, %c0_i32_0 : i32, i32
  }
  func.func @transform_2(%arg0: i32) -> (i32, i32) {
    %c0_i32 = arith.constant 0 : i32
    %c0_i32_0 = arith.constant 0 : i32
    %c0_i32_1 = arith.constant 0 : i32
    return %c0_i32, %c0_i32_0 : i32, i32
  }
  func.func @transform_3(%arg0: i32) -> (i32, i32) {
    %c0_i32 = arith.constant 0 : i32
    %c0_i32_0 = arith.constant 0 : i32
    %c0_i32_1 = arith.constant 0 : i32
    return %c0_i32, %c0_i32_0 : i32, i32
  }
  func.func @transform_4(%arg0: i32) -> (i32, i32) {
    %c0_i32 = arith.constant 0 : i32
    %c0_i32_0 = arith.constant 0 : i32
    %c0_i32_1 = arith.constant 0 : i32
    return %c0_i32, %c0_i32_0 : i32, i32
  }
  func.func @transform_5(%arg0: i32) -> (i32, i32) {
    %c0_i32 = arith.constant 0 : i32
    %c0_i32_0 = arith.constant 0 : i32
    return %arg0, %c0_i32 : i32, i32
  }
}

</mosaic_0001>

<llo_original>
// kernel: tpu_custom_call.1
$region0: #{tpu_custom_call.1}
  #allocation0 [shape = 'u32[]', space=smem, size = 0x4, offset = 0x4, fixed_abs, tag = 'smem constant byte address 0x4 - core index']
  #allocation1 [shape = 'u32[144,128]{1,0:T(1,128)}', space=vmem, size = 0x12000, scoped, tag = 'internal scratch']
  %s0 = inlined_call_operand.vmem [shape: f32[256,17], index: 0, kind: input, shape index: {}]
  %s1 = inlined_call_operand.vmem [shape: f32[17,64], index: 1, kind: input, shape index: {}]
  %s2 = inlined_call_operand.vmem [shape: f32[1,64], index: 2, kind: input, shape index: {}]
  %s3 = inlined_call_operand.vmem [shape: f32[64,6], index: 3, kind: input, shape index: {}]
  %s4 = inlined_call_operand.vmem [shape: f32[1,6], index: 4, kind: input, shape index: {}]
  %s5 = inlined_call_operand.vmem [shape: f32[256,6], index: 5, kind: output, shape index: {}]
  %s6 = sld [smem:[#allocation0]]
  $region30: #{tpu_custom_call.1} parent=0
    _
  %s8 = ssub.s32 1, %s6
  %s9 = scalar_select 0, %s8, %s6
  // Predicated region
  $region2: #{tpu_custom_call.1} parent=0 // pred_check
    _
  $region3: #{tpu_custom_call.1} parent=0 // pred_check_branch
    %11 = sbr.rel (0) target = $region5
  $region4: #{tpu_custom_call.1} parent=0 // pred_region
    _
  $region5: #{tpu_custom_call.1} parent=0 // pred_fallthru
    _
  // Predicated region
  $region6: #{tpu_custom_call.1} parent=0 // pred_check
    _
  $region7: #{tpu_custom_call.1} parent=0 // pred_check_branch
    %13 = sbr.rel (0) target = $region9
  $region8: #{tpu_custom_call.1} parent=0 // pred_region
    _
  $region9: #{tpu_custom_call.1} parent=0 // pred_fallthru
    _
  // Predicated region
  $region10: #{tpu_custom_call.1} parent=0 // pred_check
    _
  $region11: #{tpu_custom_call.1} parent=0 // pred_check_branch
    %15 = sbr.rel (0) target = $region13
  $region12: #{tpu_custom_call.1} parent=0 // pred_region
    _
  $region13: #{tpu_custom_call.1} parent=0 // pred_fallthru
    _
  // Predicated region
  $region14: #{tpu_custom_call.1} parent=0 // pred_check
    _
  $region15: #{tpu_custom_call.1} parent=0 // pred_check_branch
    %17 = sbr.rel (0) target = $region17
  $region16: #{tpu_custom_call.1} parent=0 // pred_region
    _
  $region17: #{tpu_custom_call.1} parent=0 // pred_fallthru
    _
  // Predicated region
  $region18: #{tpu_custom_call.1} parent=0 // pred_check
    _
  $region19: #{tpu_custom_call.1} parent=0 // pred_check_branch
    %19 = sbr.rel (0) target = $region21
  $region20: #{tpu_custom_call.1} parent=0 // pred_region
    _
  $region21: #{tpu_custom_call.1} parent=0 // pred_fallthru
    _
  %v20 = vld [vmem:[%s0] sm:$0xff]
  %v21 = vld [vmem:[%s0 + $0x8] sm:$0xff]
  %v22 = vld [vmem:[%s0 + $0x10] sm:$0xff]
  %v23 = vld [vmem:[%s0 + $0x18] sm:$0xff]
  %v24 = vld [vmem:[%s0 + $0x20] sm:$0xff]
  %v25 = vld [vmem:[%s0 + $0x28] sm:$0xff]
  %v26 = vld [vmem:[%s0 + $0x30] sm:$0xff]
  %v27 = vld [vmem:[%s0 + $0x38] sm:$0xff]
  %v28 = vld [vmem:[%s0 + $0x40] sm:$0xff]
  %v29 = vld [vmem:[%s0 + $0x48] sm:$0xff]
  %v30 = vld [vmem:[%s0 + $0x50] sm:$0xff]
  %v31 = vld [vmem:[%s0 + $0x58] sm:$0xff]
  %v32 = vld [vmem:[%s0 + $0x60] sm:$0xff]
  %v33 = vld [vmem:[%s0 + $0x68] sm:$0xff]
  %v34 = vld [vmem:[%s0 + $0x70] sm:$0xff]
  %v35 = vld [vmem:[%s0 + $0x78] sm:$0xff]
  %v36 = vld [vmem:[%s0 + $0x80] sm:$0xff]
  %v37 = vld [vmem:[%s0 + $0x88] sm:$0xff]
  %v38 = vld [vmem:[%s0 + $0x90] sm:$0xff]
  %v39 = vld [vmem:[%s0 + $0x98] sm:$0xff]
  %v40 = vld [vmem:[%s0 + $0xa0] sm:$0xff]
  %v41 = vld [vmem:[%s0 + $0xa8] sm:$0xff]
  %v42 = vld [vmem:[%s0 + $0xb0] sm:$0xff]
  %v43 = vld [vmem:[%s0 + $0xb8] sm:$0xff]
  %v44 = vld [vmem:[%s0 + $0xc0] sm:$0xff]
  %v45 = vld [vmem:[%s0 + $0xc8] sm:$0xff]
  %v46 = vld [vmem:[%s0 + $0xd0] sm:$0xff]
  %v47 = vld [vmem:[%s0 + $0xd8] sm:$0xff]
  %v48 = vld [vmem:[%s0 + $0xe0] sm:$0xff]
  %v49 = vld [vmem:[%s0 + $0xe8] sm:$0xff]
  %v50 = vld [vmem:[%s0 + $0xf0] sm:$0xff]
  %v51 = vld [vmem:[%s0 + $0xf8] sm:$0xff]
  %v52 = vld [vmem:[%s1] sm:$0xff]
  %v53 = vld [vmem:[%s1 + $0x8] sm:$0xff]
  %v54 = vld [vmem:[%s1 + $0x10] sm:$0x1]
  %v55 = vld [vmem:[%s2] sm:$0x1]
  %v57 = vlaneseq
  %v58 = vshrl.u32 %v57, 7
  %v59 = vsub.s32 0, %v58
  %v60 = vrot.slane %v55, %v59
  %vm62 = vcmask 138240
  %v64 = vsel %vm62, %v20, 0
  %v67 = vsel %vm62, %v21, 0
  %v70 = vsel %vm62, %v22, 0
  %v73 = vsel %vm62, %v23, 0
  %v76 = vsel %vm62, %v24, 0
  %v79 = vsel %vm62, %v25, 0
  %v82 = vsel %vm62, %v26, 0
  %v85 = vsel %vm62, %v27, 0
  %v88 = vsel %vm62, %v28, 0
  %v91 = vsel %vm62, %v29, 0
  %v94 = vsel %vm62, %v30, 0
  %v97 = vsel %vm62, %v31, 0
  %v100 = vsel %vm62, %v32, 0
  %v103 = vsel %vm62, %v33, 0
  %v106 = vsel %vm62, %v34, 0
  %v109 = vsel %vm62, %v35, 0
  %v112 = vsel %vm62, %v36, 0
  %v115 = vsel %vm62, %v37, 0
  %v118 = vsel %vm62, %v38, 0
  %v121 = vsel %vm62, %v39, 0
  %v124 = vsel %vm62, %v40, 0
  %v127 = vsel %vm62, %v41, 0
  %v130 = vsel %vm62, %v42, 0
  %v133 = vsel %vm62, %v43, 0
  %v136 = vsel %vm62, %v44, 0
  %v139 = vsel %vm62, %v45, 0
  %v142 = vsel %vm62, %v46, 0
  %v145 = vsel %vm62, %v47, 0
  %v148 = vsel %vm62, %v48, 0
  %v151 = vsel %vm62, %v49, 0
  %v154 = vsel %vm62, %v50, 0
  %v157 = vsel %vm62, %v51, 0
  %vm159 = vcmask 1040384
  %v161 = vsel %vm159, %v54, 0
  %163 = vmatprep.subr.mxu0 0.0
  %164 = vmatpush1.msra.mxu0 %v52
  %165 = vmatprep.subr.mxu0 0.0
  %166 = vmatpush1.msra.mxu0 %v53
  %167 = vmatprep.subr.mxu0 0.0
  %168 = vmatpush1.msra.mxu0 %v161
  %169 = vmatprep.subr.mxu0 0.0
  %170 = vmatpush1.msra.mxu0 0.0
  %171 = vmatprep.subr.mxu0 0.0
  %172 = vmatpush1.msra.mxu0 0.0
  %173 = vmatprep.subr.mxu0 0.0
  %174 = vmatpush1.msra.mxu0 0.0
  %175 = vmatprep.subr.mxu0 0.0
  %176 = vmatpush1.msra.mxu0 0.0
  %177 = vmatprep.subr.mxu0 0.0
  %178 = vmatpush1.msra.mxu0 0.0
  %179 = vmatprep.subr.mxu0 0.0
  %180 = vmatpush1.msra.mxu0 0.0
  %181 = vmatprep.subr.mxu0 0.0
  %182 = vmatpush1.msra.mxu0 0.0
  %183 = vmatprep.subr.mxu0 0.0
  %184 = vmatpush1.msra.mxu0 0.0
  %185 = vmatprep.subr.mxu0 0.0
  %186 = vmatpush1.msra.mxu0 0.0
  %187 = vmatprep.subr.mxu0 0.0
  %188 = vmatpush1.msra.mxu0 0.0
  %189 = vmatprep.subr.mxu0 0.0
  %190 = vmatpush1.msra.mxu0 0.0
  %191 = vmatprep.subr.mxu0 0.0
  %192 = vmatpush1.msra.mxu0 0.0
  %193 = vmatprep.subr.mxu0 0.0
  %194 = vmatpush1.msra.mxu0 0.0
  %195 = vmatprep.subr.mxu0 0.0
  %196 = vmatpush1.msra.mxu0 0.0
  %197 = vmatprep.subr.mxu0 0.0
  %198 = vmatpush1.msra.mxu0 0.0
  %199 = vmatprep.subr.mxu0 0.0
  %200 = vmatpush1.msra.mxu0 0.0
  %201 = vmatprep.subr.mxu0 0.0
  %202 = vmatpush1.msra.mxu0 0.0
  %203 = vmatprep.subr.mxu0 0.0
  %204 = vmatpush1.msra.mxu0 0.0
  %205 = vmatprep.subr.mxu0 0.0
  %206 = vmatpush1.msra.mxu0 0.0
  %207 = vmatprep.subr.mxu0 0.0
  %208 = vmatpush1.msra.mxu0 0.0
  %209 = vmatprep.subr.mxu0 0.0
  %210 = vmatpush1.msra.mxu0 0.0
  %211 = vmatprep.subr.mxu0 0.0
  %212 = vmatpush1.msra.mxu0 0.0
  %213 = vmatprep.subr.mxu0 0.0
  %214 = vmatpush1.msra.mxu0 0.0
  %215 = vmatprep.subr.mxu0 0.0
  %216 = vmatpush1.msra.mxu0 0.0
  %217 = vmatprep.subr.mxu0 0.0
  %218 = vmatpush1.msra.mxu0 0.0
  %219 = vmatprep.subr.mxu0 0.0
  %220 = vmatpush1.msra.mxu0 0.0
  %221 = vmatprep.subr.mxu0 0.0
  %222 = vmatpush1.msra.mxu0 0.0
  %223 = vmatprep.subr.mxu0 0.0
  %224 = vmatpush1.msra.mxu0 0.0
  %225 = vmatprep.subr.mxu0 0.0
  %226 = vmatpush1.msra.mxu0 0.0
  %227 = vmatprep.mubr.f32.mxu0 0.0
  %228 = vmatmul.mubr.f32.gmra.mrb[0].mxu0 %v64
  %v229 = vpop.f32.mrb[0].mxu0
  %v230 = vadd.f32 %v60, %v229
  %v231 = vpop.f32.mrb[0].mxu0
  %232 = vmatprep.mubr.f32.mxu0 0.0
  %233 = vmatmul.mubr.f32.gmra.mrb[0].mxu0 %v67
  %v234 = vpop.f32.mrb[0].mxu0
  %v235 = vadd.f32 %v60, %v234
  %v236 = vpop.f32.mrb[0].mxu0
  %237 = vmatprep.mubr.f32.mxu0 0.0
  %238 = vmatmul.mubr.f32.gmra.mrb[0].mxu0 %v70
  %v239 = vpop.f32.mrb[0].mxu0
  %v240 = vadd.f32 %v60, %v239
  %v241 = vpop.f32.mrb[0].mxu0
  %242 = vmatprep.mubr.f32.mxu0 0.0
  %243 = vmatmul.mubr.f32.gmra.mrb[0].mxu0 %v73
  %v244 = vpop.f32.mrb[0].mxu0
  %v245 = vadd.f32 %v60, %v244
  %v246 = vpop.f32.mrb[0].mxu0
  %247 = vmatprep.mubr.f32.mxu0 0.0
  %248 = vmatmul.mubr.f32.gmra.mrb[0].mxu0 %v76
  %v249 = vpop.f32.mrb[0].mxu0
  %v250 = vadd.f32 %v60, %v249
  %v251 = vpop.f32.mrb[0].mxu0
  %252 = vmatprep.mubr.f32.mxu0 0.0
  %253 = vmatmul.mubr.f32.gmra.mrb[0].mxu0 %v79
  %v254 = vpop.f32.mrb[0].mxu0
  %v255 = vadd.f32 %v60, %v254
  %v256 = vpop.f32.mrb[0].mxu0
  %257 = vmatprep.mubr.f32.mxu0 0.0
  %258 = vmatmul.mubr.f32.gmra.mrb[0].mxu0 %v82
  %v259 = vpop.f32.mrb[0].mxu0
  %v260 = vadd.f32 %v60, %v259
  %v261 = vpop.f32.mrb[0].mxu0
  %262 = vmatprep.mubr.f32.mxu0 0.0
  %263 = vmatmul.mubr.f32.gmra.mrb[0].mxu0 %v85
  %v264 = vpop.f32.mrb[0].mxu0
  %v265 = vadd.f32 %v60, %v264
  %v266 = vpop.f32.mrb[0].mxu0
  %267 = vmatprep.mubr.f32.mxu0 0.0
  %268 = vmatmul.mubr.f32.gmra.mrb[0].mxu0 %v88
  %v269 = vpop.f32.mrb[0].mxu0
  %v270 = vadd.f32 %v60, %v269
  %v271 = vpop.f32.mrb[0].mxu0
  %272 = vmatprep.mubr.f32.mxu0 0.0
  %273 = vmatmul.mubr.f32.gmra.mrb[0].mxu0 %v91
  %v274 = vpop.f32.mrb[0].mxu0
  %v275 = vadd.f32 %v60, %v274
  %v276 = vpop.f32.mrb[0].mxu0
  %277 = vmatprep.mubr.f32.mxu0 0.0
  %278 = vmatmul.mubr.f32.gmra.mrb[0].mxu0 %v94
  %v279 = vpop.f32.mrb[0].mxu0
  %v280 = vadd.f32 %v60, %v279
  %v281 = vpop.f32.mrb[0].mxu0
  %282 = vmatprep.mubr.f32.mxu0 0.0
  %283 = vmatmul.mubr.f32.gmra.mrb[0].mxu0 %v97
  %v284 = vpop.f32.mrb[0].mxu0
  %v285 = vadd.f32 %v60, %v284
  %v286 = vpop.f32.mrb[0].mxu0
  %287 = vmatprep.mubr.f32.mxu0 0.0
  %288 = vmatmul.mubr.f32.gmra.mrb[0].mxu0 %v100
  %v289 = vpop.f32.mrb[0].mxu0
  %v290 = vadd.f32 %v60, %v289
  %v291 = vpop.f32.mrb[0].mxu0
  %292 = vmatprep.mubr.f32.mxu0 0.0
  %293 = vmatmul.mubr.f32.gmra.mrb[0].mxu0 %v103
  %v294 = vpop.f32.mrb[0].mxu0
  %v295 = vadd.f32 %v60, %v294
  %v296 = vpop.f32.mrb[0].mxu0
  %297 = vmatprep.mubr.f32.mxu0 0.0
  %298 = vmatmul.mubr.f32.gmra.mrb[0].mxu0 %v106
  %v299 = vpop.f32.mrb[0].mxu0
  %v300 = vadd.f32 %v60, %v299
  %v301 = vpop.f32.mrb[0].mxu0
  %302 = vmatprep.mubr.f32.mxu0 0.0
  %303 = vmatmul.mubr.f32.gmra.mrb[0].mxu0 %v109
  %v304 = vpop.f32.mrb[0].mxu0
  %v305 = vadd.f32 %v60, %v304
  %v306 = vpop.f32.mrb[0].mxu0
  %307 = vmatprep.mubr.f32.mxu0 0.0
  %308 = vmatmul.mubr.f32.gmra.mrb[0].mxu0 %v112
  %v309 = vpop.f32.mrb[0].mxu0
  %v310 = vadd.f32 %v60, %v309
  %v311 = vpop.f32.mrb[0].mxu0
  %312 = vmatprep.mubr.f32.mxu0 0.0
  %313 = vmatmul.mubr.f32.gmra.mrb[0].mxu0 %v115
  %v314 = vpop.f32.mrb[0].mxu0
  %v315 = vadd.f32 %v60, %v314
  %v316 = vpop.f32.mrb[0].mxu0
  %317 = vmatprep.mubr.f32.mxu0 0.0
  %318 = vmatmul.mubr.f32.gmra.mrb[0].mxu0 %v118
  %v319 = vpop.f32.mrb[0].mxu0
  %v320 = vadd.f32 %v60, %v319
  %v321 = vpop.f32.mrb[0].mxu0
  %322 = vmatprep.mubr.f32.mxu0 0.0
  %323 = vmatmul.mubr.f32.gmra.mrb[0].mxu0 %v121
  %v324 = vpop.f32.mrb[0].mxu0
  %v325 = vadd.f32 %v60, %v324
  %v326 = vpop.f32.mrb[0].mxu0
  %327 = vmatprep.mubr.f32.mxu0 0.0
  %328 = vmatmul.mubr.f32.gmra.mrb[0].mxu0 %v124
  %v329 = vpop.f32.mrb[0].mxu0
  %v330 = vadd.f32 %v60, %v329
  %v331 = vpop.f32.mrb[0].mxu0
  %332 = vmatprep.mubr.f32.mxu0 0.0
  %333 = vmatmul.mubr.f32.gmra.mrb[0].mxu0 %v127
  %v334 = vpop.f32.mrb[0].mxu0
  %v335 = vadd.f32 %v60, %v334
  %v336 = vpop.f32.mrb[0].mxu0
  %337 = vmatprep.mubr.f32.mxu0 0.0
  %338 = vmatmul.mubr.f32.gmra.mrb[0].mxu0 %v130
  %v339 = vpop.f32.mrb[0].mxu0
  %v340 = vadd.f32 %v60, %v339
  %v341 = vpop.f32.mrb[0].mxu0
  %342 = vmatprep.mubr.f32.mxu0 0.0
  %343 = vmatmul.mubr.f32.gmra.mrb[0].mxu0 %v133
  %v344 = vpop.f32.mrb[0].mxu0
  %v345 = vadd.f32 %v60, %v344
  %v346 = vpop.f32.mrb[0].mxu0
  %347 = vmatprep.mubr.f32.mxu0 0.0
  %348 = vmatmul.mubr.f32.gmra.mrb[0].mxu0 %v136
  %v349 = vpop.f32.mrb[0].mxu0
  %v350 = vadd.f32 %v60, %v349
  %v351 = vpop.f32.mrb[0].mxu0
  %352 = vmatprep.mubr.f32.mxu0 0.0
  %353 = vmatmul.mubr.f32.gmra.mrb[0].mxu0 %v139
  %v354 = vpop.f32.mrb[0].mxu0
  %v355 = vadd.f32 %v60, %v354
  %v356 = vpop.f32.mrb[0].mxu0
  %357 = vmatprep.mubr.f32.mxu0 0.0
  %358 = vmatmul.mubr.f32.gmra.mrb[0].mxu0 %v142
  %v359 = vpop.f32.mrb[0].mxu0
  %v360 = vadd.f32 %v60, %v359
  %v361 = vpop.f32.mrb[0].mxu0
  %362 = vmatprep.mubr.f32.mxu0 0.0
  %363 = vmatmul.mubr.f32.gmra.mrb[0].mxu0 %v145
  %v364 = vpop.f32.mrb[0].mxu0
  %v365 = vadd.f32 %v60, %v364
  %v366 = vpop.f32.mrb[0].mxu0
  %367 = vmatprep.mubr.f32.mxu0 0.0
  %368 = vmatmul.mubr.f32.gmra.mrb[0].mxu0 %v148
  %v369 = vpop.f32.mrb[0].mxu0
  %v370 = vadd.f32 %v60, %v369
  %v371 = vpop.f32.mrb[0].mxu0
  %372 = vmatprep.mubr.f32.mxu0 0.0
  %373 = vmatmul.mubr.f32.gmra.mrb[0].mxu0 %v151
  %v374 = vpop.f32.mrb[0].mxu0
  %v375 = vadd.f32 %v60, %v374
  %v376 = vpop.f32.mrb[0].mxu0
  %377 = vmatprep.mubr.f32.mxu0 0.0
  %378 = vmatmul.mubr.f32.gmra.mrb[0].mxu0 %v154
  %v379 = vpop.f32.mrb[0].mxu0
  %v380 = vadd.f32 %v60, %v379
  %v381 = vpop.f32.mrb[0].mxu0
  %382 = vmatprep.mubr.f32.mxu0 0.0
  %383 = vmatmul.mubr.f32.gmra.mrb[0].mxu0 %v157
  %v384 = vpop.f32.mrb[0].mxu0
  %v385 = vadd.f32 %v60, %v384
  %v386 = vpop.f32.mrb[0].mxu0
  %387 = vdwg.mxu0
  %v388 = vtanh.pop %v230
  %v389 = vtanh.pop %v235
  %v390 = vtanh.pop %v240
  %v391 = vtanh.pop %v245
  %v392 = vtanh.pop %v250
  %v393 = vtanh.pop %v255
  %v394 = vtanh.pop %v260
  %v395 = vtanh.pop %v265
  %v396 = vtanh.pop %v270
  %v397 = vtanh.pop %v275
  %v398 = vtanh.pop %v280
  %v399 = vtanh.pop %v285
  %v400 = vtanh.pop %v290
  %v401 = vtanh.pop %v295
  %v402 = vtanh.pop %v300
  %v403 = vtanh.pop %v305
  %v404 = vtanh.pop %v310
  %v405 = vtanh.pop %v315
  %v406 = vtanh.pop %v320
  %v407 = vtanh.pop %v325
  %v408 = vtanh.pop %v330
  %v409 = vtanh.pop %v335
  %v410 = vtanh.pop %v340
  %v411 = vtanh.pop %v345
  %v412 = vtanh.pop %v350
  %v413 = vtanh.pop %v355
  %v414 = vtanh.pop %v360
  %v415 = vtanh.pop %v365
  %v416 = vtanh.pop %v370
  %v417 = vtanh.pop %v375
  %v418 = vtanh.pop %v380
  %v419 = vtanh.pop %v385
  %v420 = vld [vmem:[%s3] sm:$0xff]
  %v421 = vld [vmem:[%s3 + $0x8] sm:$0xff]
  %v422 = vld [vmem:[%s3 + $0x10] sm:$0xff]
  %v423 = vld [vmem:[%s3 + $0x18] sm:$0xff]
  %v424 = vld [vmem:[%s3 + $0x20] sm:$0xff]
  %v425 = vld [vmem:[%s3 + $0x28] sm:$0xff]
  %v426 = vld [vmem:[%s3 + $0x30] sm:$0xff]
  %v427 = vld [vmem:[%s3 + $0x38] sm:$0xff]
  %v428 = vld [vmem:[%s4] sm:$0x1]
  %v430 = vlaneseq
  %v431 = vshrl.u32 %v430, 7
  %v432 = vsub.s32 0, %v431
  %v433 = vrot.slane %v428, %v432
  %vm435 = vcmask 523264
  %v437 = vsel %vm435, %v388, 0
  %v440 = vsel %vm435, %v389, 0
  %v443 = vsel %vm435, %v390, 0
  %v446 = vsel %vm435, %v391, 0
  %v449 = vsel %vm435, %v392, 0
  %v452 = vsel %vm435, %v393, 0
  %v455 = vsel %vm435, %v394, 0
  %v458 = vsel %vm435, %v395, 0
  %v461 = vsel %vm435, %v396, 0
  %v464 = vsel %vm435, %v397, 0
  %v467 = vsel %vm435, %v398, 0
  %v470 = vsel %vm435, %v399, 0
  %v473 = vsel %vm435, %v400, 0
  %v476 = vsel %vm435, %v401, 0
  %v479 = vsel %vm435, %v402, 0
  %v482 = vsel %vm435, %v403, 0
  %v485 = vsel %vm435, %v404, 0
  %v488 = vsel %vm435, %v405, 0
  %v491 = vsel %vm435, %v406, 0
  %v494 = vsel %vm435, %v407, 0
  %v497 = vsel %vm435, %v408, 0
  %v500 = vsel %vm435, %v409, 0
  %v503 = vsel %vm435, %v410, 0
  %v506 = vsel %vm435, %v411, 0
  %v509 = vsel %vm435, %v412, 0
  %v512 = vsel %vm435, %v413, 0
  %v515 = vsel %vm435, %v414, 0
  %v518 = vsel %vm435, %v415, 0
  %v521 = vsel %vm435, %v416, 0
  %v524 = vsel %vm435, %v417, 0
  %v527 = vsel %vm435, %v418, 0
  %v530 = vsel %vm435, %v419, 0
  %532 = vmatprep.subr.mxu0 0.0
  %533 = vmatpush1.msra.mxu0 %v420
  %534 = vmatprep.subr.mxu0 0.0
  %535 = vmatpush1.msra.mxu0 %v421
  %536 = vmatprep.subr.mxu0 0.0
  %537 = vmatpush1.msra.mxu0 %v422
  %538 = vmatprep.subr.mxu0 0.0
  %539 = vmatpush1.msra.mxu0 %v423
  %540 = vmatprep.subr.mxu0 0.0
  %541 = vmatpush1.msra.mxu0 %v424
  %542 = vmatprep.subr.mxu0 0.0
  %543 = vmatpush1.msra.mxu0 %v425
  %544 = vmatprep.subr.mxu0 0.0
  %545 = vmatpush1.msra.mxu0 %v426
  %546 = vmatprep.subr.mxu0 0.0
  %547 = vmatpush1.msra.mxu0 %v427
  %548 = vmatprep.subr.mxu0 0.0
  %549 = vmatpush1.msra.mxu0 0.0
  %550 = vmatprep.subr.mxu0 0.0
  %551 = vmatpush1.msra.mxu0 0.0
  %552 = vmatprep.subr.mxu0 0.0
  %553 = vmatpush1.msra.mxu0 0.0
  %554 = vmatprep.subr.mxu0 0.0
  %555 = vmatpush1.msra.mxu0 0.0
  %556 = vmatprep.subr.mxu0 0.0
  %557 = vmatpush1.msra.mxu0 0.0
  %558 = vmatprep.subr.mxu0 0.0
  %559 = vmatpush1.msra.mxu0 0.0
  %560 = vmatprep.subr.mxu0 0.0
  %561 = vmatpush1.msra.mxu0 0.0
  %562 = vmatprep.subr.mxu0 0.0
  %563 = vmatpush1.msra.mxu0 0.0
  %564 = vmatprep.subr.mxu0 0.0
  %565 = vmatpush1.msra.mxu0 0.0
  %566 = vmatprep.subr.mxu0 0.0
  %567 = vmatpush1.msra.mxu0 0.0
  %568 = vmatprep.subr.mxu0 0.0
  %569 = vmatpush1.msra.mxu0 0.0
  %570 = vmatprep.subr.mxu0 0.0
  %571 = vmatpush1.msra.mxu0 0.0
  %572 = vmatprep.subr.mxu0 0.0
  %573 = vmatpush1.msra.mxu0 0.0
  %574 = vmatprep.subr.mxu0 0.0
  %575 = vmatpush1.msra.mxu0 0.0
  %576 = vmatprep.subr.mxu0 0.0
  %577 = vmatpush1.msra.mxu0 0.0
  %578 = vmatprep.subr.mxu0 0.0
  %579 = vmatpush1.msra.mxu0 0.0
  %580 = vmatprep.subr.mxu0 0.0
  %581 = vmatpush1.msra.mxu0 0.0
  %582 = vmatprep.subr.mxu0 0.0
  %583 = vmatpush1.msra.mxu0 0.0
  %584 = vmatprep.subr.mxu0 0.0
  %585 = vmatpush1.msra.mxu0 0.0
  %586 = vmatprep.subr.mxu0 0.0
  %587 = vmatpush1.msra.mxu0 0.0
  %588 = vmatprep.subr.mxu0 0.0
  %589 = vmatpush1.msra.mxu0 0.0
  %590 = vmatprep.subr.mxu0 0.0
  %591 = vmatpush1.msra.mxu0 0.0
  %592 = vmatprep.subr.mxu0 0.0
  %593 = vmatpush1.msra.mxu0 0.0
  %594 = vmatprep.subr.mxu0 0.0
  %595 = vmatpush1.msra.mxu0 0.0
  %596 = vmatprep.mubr.f32.mxu0 0.0
  %597 = vmatmul.mubr.f32.gmra.mrb[0].mxu0 %v437
  %v598 = vpop.f32.mrb[0].mxu0
  %v599 = vadd.f32 %v433, %v598
  %v600 = vpop.f32.mrb[0].mxu0
  %601 = vmatprep.mubr.f32.mxu0 0.0
  %602 = vmatmul.mubr.f32.gmra.mrb[0].mxu0 %v440
  %v603 = vpop.f32.mrb[0].mxu0
  %v604 = vadd.f32 %v433, %v603
  %v605 = vpop.f32.mrb[0].mxu0
  %606 = vmatprep.mubr.f32.mxu0 0.0
  %607 = vmatmul.mubr.f32.gmra.mrb[0].mxu0 %v443
  %v608 = vpop.f32.mrb[0].mxu0
  %v609 = vadd.f32 %v433, %v608
  %v610 = vpop.f32.mrb[0].mxu0
  %611 = vmatprep.mubr.f32.mxu0 0.0
  %612 = vmatmul.mubr.f32.gmra.mrb[0].mxu0 %v446
  %v613 = vpop.f32.mrb[0].mxu0
  %v614 = vadd.f32 %v433, %v613
  %v615 = vpop.f32.mrb[0].mxu0
  %616 = vmatprep.mubr.f32.mxu0 0.0
  %617 = vmatmul.mubr.f32.gmra.mrb[0].mxu0 %v449
  %v618 = vpop.f32.mrb[0].mxu0
  %v619 = vadd.f32 %v433, %v618
  %v620 = vpop.f32.mrb[0].mxu0
  %621 = vmatprep.mubr.f32.mxu0 0.0
  %622 = vmatmul.mubr.f32.gmra.mrb[0].mxu0 %v452
  %v623 = vpop.f32.mrb[0].mxu0
  %v624 = vadd.f32 %v433, %v623
  %v625 = vpop.f32.mrb[0].mxu0
  %626 = vmatprep.mubr.f32.mxu0 0.0
  %627 = vmatmul.mubr.f32.gmra.mrb[0].mxu0 %v455
  %v628 = vpop.f32.mrb[0].mxu0
  %v629 = vadd.f32 %v433, %v628
  %v630 = vpop.f32.mrb[0].mxu0
  %631 = vmatprep.mubr.f32.mxu0 0.0
  %632 = vmatmul.mubr.f32.gmra.mrb[0].mxu0 %v458
  %v633 = vpop.f32.mrb[0].mxu0
  %v634 = vadd.f32 %v433, %v633
  %v635 = vpop.f32.mrb[0].mxu0
  %636 = vmatprep.mubr.f32.mxu0 0.0
  %637 = vmatmul.mubr.f32.gmra.mrb[0].mxu0 %v461
  %v638 = vpop.f32.mrb[0].mxu0
  %v639 = vadd.f32 %v433, %v638
  %v640 = vpop.f32.mrb[0].mxu0
  %641 = vmatprep.mubr.f32.mxu0 0.0
  %642 = vmatmul.mubr.f32.gmra.mrb[0].mxu0 %v464
  %v643 = vpop.f32.mrb[0].mxu0
  %v644 = vadd.f32 %v433, %v643
  %v645 = vpop.f32.mrb[0].mxu0
  %646 = vmatprep.mubr.f32.mxu0 0.0
  %647 = vmatmul.mubr.f32.gmra.mrb[0].mxu0 %v467
  %v648 = vpop.f32.mrb[0].mxu0
  %v649 = vadd.f32 %v433, %v648
  %v650 = vpop.f32.mrb[0].mxu0
  %651 = vmatprep.mubr.f32.mxu0 0.0
  %652 = vmatmul.mubr.f32.gmra.mrb[0].mxu0 %v470
  %v653 = vpop.f32.mrb[0].mxu0
  %v654 = vadd.f32 %v433, %v653
  %v655 = vpop.f32.mrb[0].mxu0
  %656 = vmatprep.mubr.f32.mxu0 0.0
  %657 = vmatmul.mubr.f32.gmra.mrb[0].mxu0 %v473
  %v658 = vpop.f32.mrb[0].mxu0
  %v659 = vadd.f32 %v433, %v658
  %v660 = vpop.f32.mrb[0].mxu0
  %661 = vmatprep.mubr.f32.mxu0 0.0
  %662 = vmatmul.mubr.f32.gmra.mrb[0].mxu0 %v476
  %v663 = vpop.f32.mrb[0].mxu0
  %v664 = vadd.f32 %v433, %v663
  %v665 = vpop.f32.mrb[0].mxu0
  %666 = vmatprep.mubr.f32.mxu0 0.0
  %667 = vmatmul.mubr.f32.gmra.mrb[0].mxu0 %v479
  %v668 = vpop.f32.mrb[0].mxu0
  %v669 = vadd.f32 %v433, %v668
  %v670 = vpop.f32.mrb[0].mxu0
  %671 = vmatprep.mubr.f32.mxu0 0.0
  %672 = vmatmul.mubr.f32.gmra.mrb[0].mxu0 %v482
  %v673 = vpop.f32.mrb[0].mxu0
  %v674 = vadd.f32 %v433, %v673
  %v675 = vpop.f32.mrb[0].mxu0
  %676 = vmatprep.mubr.f32.mxu0 0.0
  %677 = vmatmul.mubr.f32.gmra.mrb[0].mxu0 %v485
  %v678 = vpop.f32.mrb[0].mxu0
  %v679 = vadd.f32 %v433, %v678
  %v680 = vpop.f32.mrb[0].mxu0
  %681 = vmatprep.mubr.f32.mxu0 0.0
  %682 = vmatmul.mubr.f32.gmra.mrb[0].mxu0 %v488
  %v683 = vpop.f32.mrb[0].mxu0
  %v684 = vadd.f32 %v433, %v683
  %v685 = vpop.f32.mrb[0].mxu0
  %686 = vmatprep.mubr.f32.mxu0 0.0
  %687 = vmatmul.mubr.f32.gmra.mrb[0].mxu0 %v491
  %v688 = vpop.f32.mrb[0].mxu0
  %v689 = vadd.f32 %v433, %v688
  %v690 = vpop.f32.mrb[0].mxu0
  %691 = vmatprep.mubr.f32.mxu0 0.0
  %692 = vmatmul.mubr.f32.gmra.mrb[0].mxu0 %v494
  %v693 = vpop.f32.mrb[0].mxu0
  %v694 = vadd.f32 %v433, %v693
  %v695 = vpop.f32.mrb[0].mxu0
  %696 = vmatprep.mubr.f32.mxu0 0.0
  %697 = vmatmul.mubr.f32.gmra.mrb[0].mxu0 %v497
  %v698 = vpop.f32.mrb[0].mxu0
  %v699 = vadd.f32 %v433, %v698
  %v700 = vpop.f32.mrb[0].mxu0
  %701 = vmatprep.mubr.f32.mxu0 0.0
  %702 = vmatmul.mubr.f32.gmra.mrb[0].mxu0 %v500
  %v703 = vpop.f32.mrb[0].mxu0
  %v704 = vadd.f32 %v433, %v703
  %v705 = vpop.f32.mrb[0].mxu0
  %706 = vmatprep.mubr.f32.mxu0 0.0
  %707 = vmatmul.mubr.f32.gmra.mrb[0].mxu0 %v503
  %v708 = vpop.f32.mrb[0].mxu0
  %v709 = vadd.f32 %v433, %v708
  %v710 = vpop.f32.mrb[0].mxu0
  %711 = vmatprep.mubr.f32.mxu0 0.0
  %712 = vmatmul.mubr.f32.gmra.mrb[0].mxu0 %v506
  %v713 = vpop.f32.mrb[0].mxu0
  %v714 = vadd.f32 %v433, %v713
  %v715 = vpop.f32.mrb[0].mxu0
  %716 = vmatprep.mubr.f32.mxu0 0.0
  %717 = vmatmul.mubr.f32.gmra.mrb[0].mxu0 %v509
  %v718 = vpop.f32.mrb[0].mxu0
  %v719 = vadd.f32 %v433, %v718
  %v720 = vpop.f32.mrb[0].mxu0
  %721 = vmatprep.mubr.f32.mxu0 0.0
  %722 = vmatmul.mubr.f32.gmra.mrb[0].mxu0 %v512
  %v723 = vpop.f32.mrb[0].mxu0
  %v724 = vadd.f32 %v433, %v723
  %v725 = vpop.f32.mrb[0].mxu0
  %726 = vmatprep.mubr.f32.mxu0 0.0
  %727 = vmatmul.mubr.f32.gmra.mrb[0].mxu0 %v515
  %v728 = vpop.f32.mrb[0].mxu0
  %v729 = vadd.f32 %v433, %v728
  %v730 = vpop.f32.mrb[0].mxu0
  %731 = vmatprep.mubr.f32.mxu0 0.0
  %732 = vmatmul.mubr.f32.gmra.mrb[0].mxu0 %v518
  %v733 = vpop.f32.mrb[0].mxu0
  %v734 = vadd.f32 %v433, %v733
  %v735 = vpop.f32.mrb[0].mxu0
  %736 = vmatprep.mubr.f32.mxu0 0.0
  %737 = vmatmul.mubr.f32.gmra.mrb[0].mxu0 %v521
  %v738 = vpop.f32.mrb[0].mxu0
  %v739 = vadd.f32 %v433, %v738
  %v740 = vpop.f32.mrb[0].mxu0
  %741 = vmatprep.mubr.f32.mxu0 0.0
  %742 = vmatmul.mubr.f32.gmra.mrb[0].mxu0 %v524
  %v743 = vpop.f32.mrb[0].mxu0
  %v744 = vadd.f32 %v433, %v743
  %v745 = vpop.f32.mrb[0].mxu0
  %746 = vmatprep.mubr.f32.mxu0 0.0
  %747 = vmatmul.mubr.f32.gmra.mrb[0].mxu0 %v527
  %v748 = vpop.f32.mrb[0].mxu0
  %v749 = vadd.f32 %v433, %v748
  %v750 = vpop.f32.mrb[0].mxu0
  %751 = vmatprep.mubr.f32.mxu0 0.0
  %752 = vmatmul.mubr.f32.gmra.mrb[0].mxu0 %v530
  %v753 = vpop.f32.mrb[0].mxu0
  %v754 = vadd.f32 %v433, %v753
  %v755 = vpop.f32.mrb[0].mxu0
  %756 = vdwg.mxu0
  %v757 = vtanh.pop %v599
  %v758 = vtanh.pop %v604
  %v759 = vtanh.pop %v609
  %v760 = vtanh.pop %v614
  %v761 = vtanh.pop %v619
  %v762 = vtanh.pop %v624
  %v763 = vtanh.pop %v629
  %v764 = vtanh.pop %v634
  %v765 = vtanh.pop %v639
  %v766 = vtanh.pop %v644
  %v767 = vtanh.pop %v649
  %v768 = vtanh.pop %v654
  %v769 = vtanh.pop %v659
  %v770 = vtanh.pop %v664
  %v771 = vtanh.pop %v669
  %v772 = vtanh.pop %v674
  %v773 = vtanh.pop %v679
  %v774 = vtanh.pop %v684
  %v775 = vtanh.pop %v689
  %v776 = vtanh.pop %v694
  %v777 = vtanh.pop %v699
  %v778 = vtanh.pop %v704
  %v779 = vtanh.pop %v709
  %v780 = vtanh.pop %v714
  %v781 = vtanh.pop %v719
  %v782 = vtanh.pop %v724
  %v783 = vtanh.pop %v729
  %v784 = vtanh.pop %v734
  %v785 = vtanh.pop %v739
  %v786 = vtanh.pop %v744
  %v787 = vtanh.pop %v749
  %v788 = vtanh.pop %v754
  %vm789 = vcmask 48128
  %790 = vst.msk [vmem:[%s5] sm:$0xff] %vm789, %v757
  %791 = vst.msk [vmem:[%s5 + $0x8] sm:$0xff] %vm789, %v758
  %792 = vst.msk [vmem:[%s5 + $0x10] sm:$0xff] %vm789, %v759
  %793 = vst.msk [vmem:[%s5 + $0x18] sm:$0xff] %vm789, %v760
  %794 = vst.msk [vmem:[%s5 + $0x20] sm:$0xff] %vm789, %v761
  %795 = vst.msk [vmem:[%s5 + $0x28] sm:$0xff] %vm789, %v762
  %796 = vst.msk [vmem:[%s5 + $0x30] sm:$0xff] %vm789, %v763
  %797 = vst.msk [vmem:[%s5 + $0x38] sm:$0xff] %vm789, %v764
  %798 = vst.msk [vmem:[%s5 + $0x40] sm:$0xff] %vm789, %v765
  %799 = vst.msk [vmem:[%s5 + $0x48] sm:$0xff] %vm789, %v766
  %800 = vst.msk [vmem:[%s5 + $0x50] sm:$0xff] %vm789, %v767
  %801 = vst.msk [vmem:[%s5 + $0x58] sm:$0xff] %vm789, %v768
  %802 = vst.msk [vmem:[%s5 + $0x60] sm:$0xff] %vm789, %v769
  %803 = vst.msk [vmem:[%s5 + $0x68] sm:$0xff] %vm789, %v770
  %804 = vst.msk [vmem:[%s5 + $0x70] sm:$0xff] %vm789, %v771
  %805 = vst.msk [vmem:[%s5 + $0x78] sm:$0xff] %vm789, %v772
  %806 = vst.msk [vmem:[%s5 + $0x80] sm:$0xff] %vm789, %v773
  %807 = vst.msk [vmem:[%s5 + $0x88] sm:$0xff] %vm789, %v774
  %808 = vst.msk [vmem:[%s5 + $0x90] sm:$0xff] %vm789, %v775
  %809 = vst.msk [vmem:[%s5 + $0x98] sm:$0xff] %vm789, %v776
  %810 = vst.msk [vmem:[%s5 + $0xa0] sm:$0xff] %vm789, %v777
  %811 = vst.msk [vmem:[%s5 + $0xa8] sm:$0xff] %vm789, %v778
  %812 = vst.msk [vmem:[%s5 + $0xb0] sm:$0xff] %vm789, %v779
  %813 = vst.msk [vmem:[%s5 + $0xb8] sm:$0xff] %vm789, %v780
  %814 = vst.msk [vmem:[%s5 + $0xc0] sm:$0xff] %vm789, %v781
  %815 = vst.msk [vmem:[%s5 + $0xc8] sm:$0xff] %vm789, %v782
  %816 = vst.msk [vmem:[%s5 + $0xd0] sm:$0xff] %vm789, %v783
  %817 = vst.msk [vmem:[%s5 + $0xd8] sm:$0xff] %vm789, %v784
  %818 = vst.msk [vmem:[%s5 + $0xe0] sm:$0xff] %vm789, %v785
  %819 = vst.msk [vmem:[%s5 + $0xe8] sm:$0xff] %vm789, %v786
  %820 = vst.msk [vmem:[%s5 + $0xf0] sm:$0xff] %vm789, %v787
  %821 = vst.msk [vmem:[%s5 + $0xf8] sm:$0xff] %vm789, %v788
  // Predicated region
  $region22: #{tpu_custom_call.1} parent=0 // pred_check
    _
  $region23: #{tpu_custom_call.1} parent=0 // pred_check_branch
    %823 = sbr.rel (0) target = $region25
  $region24: #{tpu_custom_call.1} parent=0 // pred_region
    _
  $region25: #{tpu_custom_call.1} parent=0 // pred_fallthru
    _
  // Predicated region
  $region26: #{tpu_custom_call.1} parent=0 // pred_check
    _
  $region27: #{tpu_custom_call.1} parent=0 // pred_check_branch
    %825 = sbr.rel (0) target = $region29
  $region28: #{tpu_custom_call.1} parent=0 // pred_region
    _
  $region29: #{tpu_custom_call.1} parent=0 // pred_fallthru
    _

</llo_original>
